<compile_context>
chip_gen: v7x
topology: tpu7x:2x2x1
jax: 0.10.0
libtpu: 0.0.40
codegen_flags: <defaults>
</compile_context>

<pallas_src>
import jax
import jax.numpy as jnp
from jax.experimental import pallas as pl
from jax.experimental.pallas import tpu as pltpu

FEAT_PAD = 16   # hidden width (15) zero-padded to one sublane-aligned size
NUM_LAYERS = 4


def _round_up(n, m):
    return (n + m - 1) // m * m


def _make_kernel(in_f, out_f):
    """Kernel closure over the (static) real input/output feature counts."""

    def mlp_kernel(x_ref, w_ref, b_ref, o_ref):
        # x_ref: (in_f, TB)   real input features x batch-tile (batch on lanes)
        # w_ref: (4, 16, 16)  per-layer weights, PyTorch (out, in) layout, zero-padded
        # b_ref: (4, 16, 1)   per-layer biases, zero-padded
        # o_ref: (out_f, TB)  only real output rows are computed/stored (lane-dense)

        # Layer 1: only the first `in_f` weight columns are real -> K=in_f matmul,
        # no need to zero-extend the input to 16 rows.
        z = jnp.dot(w_ref[0, :, :in_f], x_ref[...],
                    preferred_element_type=jnp.float32) + b_ref[0]
        # sigmoid(z) = 0.5*tanh(z/2)+0.5 : tanh on the EUP, no VPU divide, no overflow
        h = 0.5 * jnp.tanh(0.5 * z) + 0.5

        # Hidden layers 2 and 3: full padded (16,16)x(16,TB) MXU dots.
        # Padded row 15 of h is sigmoid(0)=0.5; the zero padded weight columns kill it.
        for l in (1, 2):
            z = jnp.dot(w_ref[l], h, preferred_element_type=jnp.float32) + b_ref[l]
            h = 0.5 * jnp.tanh(0.5 * z) + 0.5

        # Output layer: compute only the real row(s) -> (out_f, TB) lane-dense store.
        o_ref[...] = (jnp.dot(w_ref[3, :out_f, :], h,
                              preferred_element_type=jnp.float32)
                      + b_ref[3, :out_f]).astype(o_ref.dtype)

    return mlp_kernel


def _pack_params(params):
    """Pack PyTorch-layout weights/biases into two zero-padded VMEM-friendly slabs."""
    w_slab = jnp.zeros((NUM_LAYERS, FEAT_PAD, FEAT_PAD), jnp.float32)
    b_slab = jnp.zeros((NUM_LAYERS, FEAT_PAD, 1), jnp.float32)
    for l in range(NUM_LAYERS):
        w = jnp.asarray(params[f"w{l + 1}"], jnp.float32)              # (out, in)
        b = jnp.asarray(params[f"b{l + 1}"], jnp.float32).reshape(-1)  # (out,)
        out_f, in_f = w.shape
        w_slab = w_slab.at[l, :out_f, :in_f].set(w)
        b_slab = b_slab.at[l, :out_f, 0].set(b)
    return w_slab, b_slab


def multilayer_network(x, params, *, block_batch=8192):
    """Forward pass of the 4->15->15->15->1 MLP (matches MultiLayerNetwork.forward).

    x: (B, input_size) float32.
    params: dict with PyTorch-layout weights w1..w4 of shape (out_features, in_features)
            and biases b1..b4 of shape (out_features,).
    Returns: (B, output_size) float32.
    """
    B, in_f = x.shape
    hid = params["w1"].shape[0]
    out_f = params["w4"].shape[0]
    assert in_f <= FEAT_PAD and hid <= FEAT_PAD and out_f <= FEAT_PAD

    # Batch tile: multiple of 128 lanes. Large by default to amortize ~0.35 us/step
    # grid overhead, but capped so the grid keeps >= 2 steps when the batch allows
    # (v7x megacore: the "parallel" grid axis is what splits work across its 2 TCs).
    b128 = _round_up(B, 128)
    tb_cap = max(128, _round_up(block_batch, 128))
    if b128 >= 256:
        half = _round_up(b128 // 2, 128)       # ceil(b128/2) rounded to 128
        tb = min(tb_cap, half)
    else:
        tb = b128
    n_steps = -(-b128 // tb)
    b_pad = n_steps * tb

    # Lane-dense transposed input slab: (in_features, batch), batch-padded only.
    xt = jnp.pad(x.astype(jnp.float32).T, ((0, 0), (0, b_pad - B)))
    w_slab, b_slab = _pack_params(params)

    # Advisory cost estimate: tiny, bandwidth-bound custom call.
    flops = 2 * b_pad * (FEAT_PAD * in_f + 2 * FEAT_PAD * FEAT_PAD + out_f * FEAT_PAD)
    transcendentals = 3 * FEAT_PAD * b_pad
    bytes_accessed = 4 * (in_f + out_f) * b_pad + w_slab.size * 4 + b_slab.size * 4

    kernel = _make_kernel(in_f, out_f)

    out_t = pl.pallas_call(
        kernel,
        out_shape=jax.ShapeDtypeStruct((out_f, b_pad), jnp.float32),
        grid=(n_steps,),
        in_specs=[
            # slim activation tile: pipelined / double-buffered over the batch grid
            pl.BlockSpec((in_f, tb), lambda i: (0, i)),
            # weight & bias slabs: constant block index -> DMA'd into VMEM once
            pl.BlockSpec((NUM_LAYERS, FEAT_PAD, FEAT_PAD), lambda i: (0, 0, 0)),
            pl.BlockSpec((NUM_LAYERS, FEAT_PAD, 1), lambda i: (0, 0, 0)),
        ],
        out_specs=pl.BlockSpec((out_f, tb), lambda i: (0, i)),
        compiler_params=pltpu.CompilerParams(
            dimension_semantics=("parallel",),   # shard batch grid across TCs (v7x)
        ),
        cost_estimate=pl.CostEstimate(
            flops=int(flops),
            transcendentals=int(transcendentals),
            bytes_accessed=int(bytes_accessed),
        ),
    )(xt, w_slab, b_slab)

    # Drop batch padding; (1, B) -> (B, 1) via reshape (free), general case via .T.
    if out_f == 1:
        return out_t[0, :B].reshape(B, 1)
    return out_t[:, :B].T


def init_params(key, input_size=4, hidden_size=15, output_size=1):
    """Deterministic init mimicking torch.nn.Linear's U(-1/sqrt(fan_in), 1/sqrt(fan_in)).

    Weights are stored in native PyTorch layout: (out_features, in_features).
    """
    dims = [(hidden_size, input_size),
            (hidden_size, hidden_size),
            (hidden_size, hidden_size),
            (output_size, hidden_size)]
    params = {}
    for i, (fan_out, fan_in) in enumerate(dims, start=1):
        key, kw, kb = jax.random.split(key, 3)
        bound = 1.0 / (fan_in ** 0.5)
        params[f"w{i}"] = jax.random.uniform(
            kw, (fan_out, fan_in), jnp.float32, minval=-bound, maxval=bound)
        params[f"b{i}"] = jax.random.uniform(
            kb, (fan_out,), jnp.float32, minval=-bound, maxval=bound)
    return params


def reference_forward(x, params):
    """Pure-JAX reference (PyTorch semantics: y = x @ W.T + b)."""
    h = jax.nn.sigmoid(x @ params["w1"].T + params["b1"])
    h = jax.nn.sigmoid(h @ params["w2"].T + params["b2"])
    h = jax.nn.sigmoid(h @ params["w3"].T + params["b3"])
    return h @ params["w4"].T + params["b4"]


if __name__ == "__main__":
    key = jax.random.PRNGKey(0)
    key, kx = jax.random.split(key)

    batch, input_size, hidden_size, output_size = 300, 4, 15, 1
    x = jax.random.normal(kx, (batch, input_size), jnp.float32)
    params = init_params(key, input_size, hidden_size, output_size)

    # batch=300 -> tile clamp gives a 2-step grid, exercising the pipelined batch
    # grid, the batch-padding path, and the megacore-parallel axis.
    out = multilayer_network(x, params)
    out = jax.block_until_ready(out)

    ref = reference_forward(x, params)
    assert out.shape == (batch, output_size)
    assert jnp.allclose(out, ref, atol=1e-4, rtol=1e-4)

    print("KERNEL_OK")
</pallas_src>

<mosaic_0001>
module attributes {stable_mosaic.version = 11 : i64} {
  func.func @mlp_kernel(%arg0: i32, %arg1: memref<4x256xf32, #tpu.memory_space<vmem>>, %arg2: memref<4x16x16xf32, #tpu.memory_space<vmem>>, %arg3: memref<4x16x1xf32, #tpu.memory_space<vmem>>, %arg4: memref<1x256xf32, #tpu.memory_space<vmem>>) attributes {dimension_semantics = [#tpu.dimension_semantics<parallel>], iteration_bounds = array<i64: 2>, scalar_prefetch = 0 : i64, scratch_operands = 0 : i64, tpu.core_type = #tpu.core_type<tc>, window_params = [{transform_indices = @transform_0, window_bounds = array<i64: 4, 256>}, {pipeline_mode = #tpu.pipeline_mode<synchronous>, transform_indices = @transform_1, window_bounds = array<i64: 4, 16, 16>}, {pipeline_mode = #tpu.pipeline_mode<synchronous>, transform_indices = @transform_2, window_bounds = array<i64: 4, 16, 1>}, {transform_indices = @transform_3, window_bounds = array<i64: 1, 256>}]} {
    %c0 = arith.constant 0 : index
    %c0_0 = arith.constant 0 : index
    %c0_1 = arith.constant 0 : index
    %0 = vector.load %arg2[%c0, %c0_0, %c0_1] : memref<4x16x16xf32, #tpu.memory_space<vmem>>, vector<1x16x4xf32>
    %1 = vector.shape_cast %0 : vector<1x16x4xf32> to vector<16x4xf32>
    %c0_2 = arith.constant 0 : index
    %c0_3 = arith.constant 0 : index
    %2 = vector.load %arg1[%c0_2, %c0_3] : memref<4x256xf32, #tpu.memory_space<vmem>>, vector<4x256xf32>
    %cst = arith.constant dense<0.000000e+00> : vector<16x256xf32>
    %3 = tpu.matmul %1, %2, %cst {dimension_numbers = #tpu.dot_dimension_numbers<[1], [0], [0], [1], [0, 0, 1, 1], [], []>} : vector<16x4xf32>, vector<4x256xf32>, vector<16x256xf32> -> vector<16x256xf32>
    %c0_4 = arith.constant 0 : index
    %c0_5 = arith.constant 0 : index
    %c0_6 = arith.constant 0 : index
    %4 = vector.load %arg3[%c0_4, %c0_5, %c0_6] : memref<4x16x1xf32, #tpu.memory_space<vmem>>, vector<1x16x1xf32>
    %5 = vector.shape_cast %4 : vector<1x16x1xf32> to vector<16x1xf32>
    %6 = vector.broadcast %5 : vector<16x1xf32> to vector<16x256xf32>
    %7 = arith.addf %3, %6 : vector<16x256xf32>
    %cst_7 = arith.constant 5.000000e-01 : f32
    %8 = vector.broadcast %cst_7 : f32 to vector<16x256xf32>
    %9 = arith.mulf %8, %7 : vector<16x256xf32>
    %10 = math.tanh %9 : vector<16x256xf32>
    %cst_8 = arith.constant 5.000000e-01 : f32
    %11 = vector.broadcast %cst_8 : f32 to vector<16x256xf32>
    %12 = arith.mulf %11, %10 : vector<16x256xf32>
    %cst_9 = arith.constant 5.000000e-01 : f32
    %13 = vector.broadcast %cst_9 : f32 to vector<16x256xf32>
    %14 = arith.addf %12, %13 : vector<16x256xf32>
    %c1 = arith.constant 1 : index
    %c0_10 = arith.constant 0 : index
    %c0_11 = arith.constant 0 : index
    %15 = vector.load %arg2[%c1, %c0_10, %c0_11] : memref<4x16x16xf32, #tpu.memory_space<vmem>>, vector<1x16x16xf32>
    %16 = vector.shape_cast %15 : vector<1x16x16xf32> to vector<16x16xf32>
    %cst_12 = arith.constant dense<0.000000e+00> : vector<16x256xf32>
    %17 = tpu.matmul %16, %14, %cst_12 {dimension_numbers = #tpu.dot_dimension_numbers<[1], [0], [0], [1], [0, 0, 1, 1], [], []>} : vector<16x16xf32>, vector<16x256xf32>, vector<16x256xf32> -> vector<16x256xf32>
    %c1_13 = arith.constant 1 : index
    %c0_14 = arith.constant 0 : index
    %c0_15 = arith.constant 0 : index
    %18 = vector.load %arg3[%c1_13, %c0_14, %c0_15] : memref<4x16x1xf32, #tpu.memory_space<vmem>>, vector<1x16x1xf32>
    %19 = vector.shape_cast %18 : vector<1x16x1xf32> to vector<16x1xf32>
    %20 = vector.broadcast %19 : vector<16x1xf32> to vector<16x256xf32>
    %21 = arith.addf %17, %20 : vector<16x256xf32>
    %cst_16 = arith.constant 5.000000e-01 : f32
    %22 = vector.broadcast %cst_16 : f32 to vector<16x256xf32>
    %23 = arith.mulf %22, %21 : vector<16x256xf32>
    %24 = math.tanh %23 : vector<16x256xf32>
    %cst_17 = arith.constant 5.000000e-01 : f32
    %25 = vector.broadcast %cst_17 : f32 to vector<16x256xf32>
    %26 = arith.mulf %25, %24 : vector<16x256xf32>
    %cst_18 = arith.constant 5.000000e-01 : f32
    %27 = vector.broadcast %cst_18 : f32 to vector<16x256xf32>
    %28 = arith.addf %26, %27 : vector<16x256xf32>
    %c2 = arith.constant 2 : index
    %c0_19 = arith.constant 0 : index
    %c0_20 = arith.constant 0 : index
    %29 = vector.load %arg2[%c2, %c0_19, %c0_20] : memref<4x16x16xf32, #tpu.memory_space<vmem>>, vector<1x16x16xf32>
    %30 = vector.shape_cast %29 : vector<1x16x16xf32> to vector<16x16xf32>
    %cst_21 = arith.constant dense<0.000000e+00> : vector<16x256xf32>
    %31 = tpu.matmul %30, %28, %cst_21 {dimension_numbers = #tpu.dot_dimension_numbers<[1], [0], [0], [1], [0, 0, 1, 1], [], []>} : vector<16x16xf32>, vector<16x256xf32>, vector<16x256xf32> -> vector<16x256xf32>
    %c2_22 = arith.constant 2 : index
    %c0_23 = arith.constant 0 : index
    %c0_24 = arith.constant 0 : index
    %32 = vector.load %arg3[%c2_22, %c0_23, %c0_24] : memref<4x16x1xf32, #tpu.memory_space<vmem>>, vector<1x16x1xf32>
    %33 = vector.shape_cast %32 : vector<1x16x1xf32> to vector<16x1xf32>
    %34 = vector.broadcast %33 : vector<16x1xf32> to vector<16x256xf32>
    %35 = arith.addf %31, %34 : vector<16x256xf32>
    %cst_25 = arith.constant 5.000000e-01 : f32
    %36 = vector.broadcast %cst_25 : f32 to vector<16x256xf32>
    %37 = arith.mulf %36, %35 : vector<16x256xf32>
    %38 = math.tanh %37 : vector<16x256xf32>
    %cst_26 = arith.constant 5.000000e-01 : f32
    %39 = vector.broadcast %cst_26 : f32 to vector<16x256xf32>
    %40 = arith.mulf %39, %38 : vector<16x256xf32>
    %cst_27 = arith.constant 5.000000e-01 : f32
    %41 = vector.broadcast %cst_27 : f32 to vector<16x256xf32>
    %42 = arith.addf %40, %41 : vector<16x256xf32>
    %c3 = arith.constant 3 : index
    %c0_28 = arith.constant 0 : index
    %c0_29 = arith.constant 0 : index
    %43 = vector.load %arg2[%c3, %c0_28, %c0_29] : memref<4x16x16xf32, #tpu.memory_space<vmem>>, vector<1x1x16xf32>
    %44 = vector.shape_cast %43 : vector<1x1x16xf32> to vector<1x16xf32>
    %cst_30 = arith.constant dense<0.000000e+00> : vector<1x256xf32>
    %45 = tpu.matmul %44, %42, %cst_30 {dimension_numbers = #tpu.dot_dimension_numbers<[1], [0], [0], [1], [0, 0, 1, 1], [], []>} : vector<1x16xf32>, vector<16x256xf32>, vector<1x256xf32> -> vector<1x256xf32>
    %c3_31 = arith.constant 3 : index
    %c0_32 = arith.constant 0 : index
    %c0_33 = arith.constant 0 : index
    %46 = vector.load %arg3[%c3_31, %c0_32, %c0_33] : memref<4x16x1xf32, #tpu.memory_space<vmem>>, vector<1x1x1xf32>
    %47 = vector.shape_cast %46 : vector<1x1x1xf32> to vector<1x1xf32>
    %48 = vector.broadcast %47 : vector<1x1xf32> to vector<1x256xf32>
    %49 = arith.addf %45, %48 : vector<1x256xf32>
    %c0_34 = arith.constant 0 : index
    %c0_35 = arith.constant 0 : index
    %50 = vector.load %arg4[%c0_34, %c0_35] : memref<1x256xf32, #tpu.memory_space<vmem>>, vector<1x256xf32>
    tpu.vector_store %arg4[%c0_34, %c0_35], %49 {strides = array<i32>} : memref<1x256xf32, #tpu.memory_space<vmem>>, vector<1x256xf32>,
    return
  }
  func.func @transform_0(%arg0: i32) -> (i32, i32) {
    %c0_i32 = arith.constant 0 : i32
    %c0_i32_0 = arith.constant 0 : i32
    return %c0_i32, %arg0 : i32, i32
  }
  func.func @transform_1(%arg0: i32) -> (i32, i32, i32) {
    %c0_i32 = arith.constant 0 : i32
    %c0_i32_0 = arith.constant 0 : i32
    %c0_i32_1 = arith.constant 0 : i32
    %c0_i32_2 = arith.constant 0 : i32
    return %c0_i32, %c0_i32_0, %c0_i32_1 : i32, i32, i32
  }
  func.func @transform_2(%arg0: i32) -> (i32, i32, i32) {
    %c0_i32 = arith.constant 0 : i32
    %c0_i32_0 = arith.constant 0 : i32
    %c0_i32_1 = arith.constant 0 : i32
    %c0_i32_2 = arith.constant 0 : i32
    return %c0_i32, %c0_i32_0, %c0_i32_1 : i32, i32, i32
  }
  func.func @transform_3(%arg0: i32) -> (i32, i32) {
    %c0_i32 = arith.constant 0 : i32
    %c0_i32_0 = arith.constant 0 : i32
    return %c0_i32, %arg0 : i32, i32
  }
}

</mosaic_0001>

<llo_original>
// kernel: tpu_custom_call.1
$region0: #{tpu_custom_call.1}
  #allocation0 [shape = 'u32[]', space=smem, size = 0x4, offset = 0x4, fixed_abs, tag = 'smem constant byte address 0x4 - core index']
  #allocation1 [shape = 'u32[144,128]{1,0:T(1,128)}', space=vmem, size = 0x12000, scoped, tag = 'internal scratch']
  %s0 = inlined_call_operand.hbm [shape: f32[4,512], index: 0, kind: input, shape index: {}]
  %s1 = inlined_call_operand.vmem [shape: f32[4,16,16], index: 1, kind: input, shape index: {}]
  %s2 = inlined_call_operand.vmem [shape: f32[4,16,1], index: 2, kind: input, shape index: {}]
  %s3 = inlined_call_operand.hbm [shape: f32[1,512], index: 3, kind: output, shape index: {}]
  %s4 = sld [smem:[#allocation0]]
  $region49: #{tpu_custom_call.1} parent=0
    _
  %s6 = ssub.s32 1, %s4
  %s7 = scalar_select 0, %s6, %s4
  $region1: #{tpu_custom_call.1} parent=0
    #allocation2 [shape = 'u8[8192]{0}', space=vmem, size = 0x2000, scoped, tag = 'input window, operand 0']
    #allocation3 [shape = 's32[2]{0}', space=sflag, size = 0x8, scoped, tag = 'scoped memory for tpu_custom_call.1']
    #allocation4 [shape = 's32[2]{0}', space=sflag, size = 0x8, scoped, tag = 'scoped memory for tpu_custom_call.1']
    #allocation5 [shape = 'u8[2048]{0}', space=vmem, size = 0x800, scoped, tag = 'output window, operand 0']
    %8 = vsyncpa [#allocation3], 0
    %s9 = scalar_lea.sflag [#allocation3], 1
    %10 = vsyncpa %s9, 0
    %11 = vsyncpa [#allocation4], 0
    %s12 = scalar_lea.sflag [#allocation4], 1
    %13 = vsyncpa %s12, 0
    loop: start=0, step=1, limit=4
    $region2: #{tpu_custom_call.1} parent=1 // loop_pre_header
      _
    $region3: #{tpu_custom_call.1} parent=1 // loop_header
      %s15 = sphi 0, %s19
      %p16 = scmp.ge.s32.totalorder %s15, 4
      %s25 = sphi 0, %s27
      %s28 = sphi 0, %s25
      %s29 = sphi 0, %s28
      %s45 = sphi 0, %s29
      %s49 = sphi 0, %s49
      %s51 = sphi 0, %s49
      %s52 = sphi 0, %s51
      %s66 = sphi 0, %s52
      %s70 = sphi 0, %s70
      %s72 = sphi 0, %s70
      %s73 = sphi 0, %s72
      %s87 = sphi 0, %s73
      %s93 = sphi 0, %s95
      %s96 = sphi 0, %s93
      %s97 = sphi 0, %s96
      %s113 = sphi 0, %s97
    $region4: #{tpu_custom_call.1} parent=1 // loop_header_branch
      %18 = sbr.rel (%p16) target = $region8
    $region5: #{tpu_custom_call.1} parent=1 // loop_body
      %s20 = ssub.s32 %s15, 1
      %s21 = ssub.s32 %s15, 2
      %s22 = sadd.s32 %s15, 1
      %s23 = ssub.s32 %s15, %s22
      %p24 = scmp.eq.s32.totalorder %s23, 0
      %s26 = sadd.s32 %s25, 1
      %s27 = scalar_select %p24, %s25, %s26
      %p30 = pneg %p24
      %p31 = scmp.eq.s32.totalorder %s15, 1
      %p32 = por %p30, %p31
      %p33 = scmp.ne.s32.totalorder %s25, %s28
      %p34 = scmp.eq.s32.totalorder %s15, 0
      %p35 = por %p33, %p34
      %p36 = scmp.ne.s32.totalorder %s25, %s28
      %p37 = scmp.eq.s32.totalorder %s20, 1
      %p38 = por %p36, %p37
      %p39 = scmp.ne.s32.totalorder %s28, %s29
      %p40 = scmp.eq.s32.totalorder %s20, 0
      %p41 = por %p39, %p40
      %p42 = scmp.ne.s32.totalorder %s28, %s29
      %p43 = scmp.eq.s32.totalorder %s21, 1
      %p44 = por %p42, %p43
      %p46 = scmp.ne.s32.totalorder %s29, %s45
      %p47 = scmp.eq.s32.totalorder %s21, 0
      %p48 = por %p46, %p47
      %s50 = sadd.s32 %s49, 1
      %p53 = scmp.eq.s32.totalorder %s15, 1
      %p54 = scmp.ne.s32.totalorder %s49, %s51
      %p55 = scmp.eq.s32.totalorder %s15, 0
      %p56 = por %p54, %p55
      %p57 = scmp.ne.s32.totalorder %s49, %s51
      %p58 = scmp.eq.s32.totalorder %s20, 1
      %p59 = por %p57, %p58
      %p60 = scmp.ne.s32.totalorder %s51, %s52
      %p61 = scmp.eq.s32.totalorder %s20, 0
      %p62 = por %p60, %p61
      %p63 = scmp.ne.s32.totalorder %s51, %s52
      %p64 = scmp.eq.s32.totalorder %s21, 1
      %p65 = por %p63, %p64
      %p67 = scmp.ne.s32.totalorder %s52, %s66
      %p68 = scmp.eq.s32.totalorder %s21, 0
      %p69 = por %p67, %p68
      %s71 = sadd.s32 %s70, 1
      %p74 = scmp.eq.s32.totalorder %s15, 1
      %p75 = scmp.ne.s32.totalorder %s70, %s72
      %p76 = scmp.eq.s32.totalorder %s15, 0
      %p77 = por %p75, %p76
      %p78 = scmp.ne.s32.totalorder %s70, %s72
      %p79 = scmp.eq.s32.totalorder %s20, 1
      %p80 = por %p78, %p79
      %p81 = scmp.ne.s32.totalorder %s72, %s73
      %p82 = scmp.eq.s32.totalorder %s20, 0
      %p83 = por %p81, %p82
      %p84 = scmp.ne.s32.totalorder %s72, %s73
      %p85 = scmp.eq.s32.totalorder %s21, 1
      %p86 = por %p84, %p85
      %p88 = scmp.ne.s32.totalorder %s73, %s87
      %p89 = scmp.eq.s32.totalorder %s21, 0
      %p90 = por %p88, %p89
      %s91 = ssub.s32 %s15, %s22
      %p92 = scmp.eq.s32.totalorder %s91, 0
      %s94 = sadd.s32 %s93, 1
      %s95 = scalar_select %p92, %s93, %s94
      %p98 = pneg %p92
      %p99 = scmp.eq.s32.totalorder %s15, 1
      %p100 = por %p98, %p99
      %p101 = scmp.ne.s32.totalorder %s93, %s96
      %p102 = scmp.eq.s32.totalorder %s15, 0
      %p103 = por %p101, %p102
      %p104 = scmp.ne.s32.totalorder %s93, %s96
      %p105 = scmp.eq.s32.totalorder %s20, 1
      %p106 = por %p104, %p105
      %p107 = scmp.ne.s32.totalorder %s96, %s97
      %p108 = scmp.eq.s32.totalorder %s20, 0
      %p109 = por %p107, %p108
      %p110 = scmp.ne.s32.totalorder %s96, %s97
      %p111 = scmp.eq.s32.totalorder %s21, 1
      %p112 = por %p110, %p111
      %p114 = scmp.ne.s32.totalorder %s97, %s113
      %p115 = scmp.eq.s32.totalorder %s21, 0
      %p116 = por %p114, %p115
      %p117 = scmp.le.s32.totalorder 1, %s15
      %p118 = scmp.lt.s32.totalorder %s15, 3
      %p119 = pnand %p117, %p118
      %p120 = pneg %p119
      // Predicated region
      $region9: #{tpu_custom_call.1} parent=5 // pred_check
        _
      $region10: #{tpu_custom_call.1} parent=5 // pred_check_branch
        %122 = sbr.rel (%p119) target = $region12
      $region11: #{tpu_custom_call.1} parent=5 // pred_region
        %s123 = ssub.s32 %s15, 1
        // Predicated region
        $region13: #{tpu_custom_call.1} parent=11 // pred_check
          %p124 = pneg %p62
        $region14: #{tpu_custom_call.1} parent=11 // pred_check_branch
          %126 = sbr.rel (%p124) target = $region16
        $region15: #{tpu_custom_call.1} parent=11 // pred_region
          _
        $region16: #{tpu_custom_call.1} parent=11 // pred_fallthru
          _
        // Predicated region
        $region17: #{tpu_custom_call.1} parent=11 // pred_check
          %p127 = pneg %p83
        $region18: #{tpu_custom_call.1} parent=11 // pred_check_branch
          %129 = sbr.rel (%p127) target = $region20
        $region19: #{tpu_custom_call.1} parent=11 // pred_region
          _
        $region20: #{tpu_custom_call.1} parent=11 // pred_fallthru
          _
      $region12: #{tpu_custom_call.1} parent=5 // pred_fallthru
        _
      %p130 = scmp.lt.s32.totalorder %s15, 2
      // Predicated region
      $region21: #{tpu_custom_call.1} parent=5 // pred_check
        %p131 = pneg %p130
      $region22: #{tpu_custom_call.1} parent=5 // pred_check_branch
        %133 = sbr.rel (%p131) target = $region24
      $region23: #{tpu_custom_call.1} parent=5 // pred_region
        // Predicated region
        $region25: #{tpu_custom_call.1} parent=23 // pred_check
          %p134 = pneg %p35
        $region26: #{tpu_custom_call.1} parent=23 // pred_check_branch
          %136 = sbr.rel (%p134) target = $region28
        $region27: #{tpu_custom_call.1} parent=23 // pred_region
          %s137 = sand.u32 %s25, 1
          %s138 = scalar_lea.sflag [#allocation3], %s137
          %s139 = sand.u32 %s25, 1
          %s140 = smul.addr %s139, 8
          %s141 = scalar_lea.vmem [#allocation2], %s140
          %s142 = smul.u32 2, %s15
          %s144 = ssub.s32 128, 128
          %145 = vsyncadd %s138, %s144
          %s146 = smul.addr %s142, 64
          %s147 = scalar_lea.hbm %s0, %s146
          %s149 = sshll.u32 %s141, 4
          %s150 = int_to_ptr.vmem [resolvable:$true] %s149
          %152 = dma.hbm_to_vmem [thread:$0]  %s147, 128, %s150, %s138
        $region28: #{tpu_custom_call.1} parent=23 // pred_fallthru
          _
      $region24: #{tpu_custom_call.1} parent=5 // pred_fallthru
        _
      %p153 = scmp.le.s32.totalorder 1, %s15
      %p154 = scmp.lt.s32.totalorder %s15, 3
      %p155 = pnand %p153, %p154
      %p156 = pneg %p155
      // Predicated region
      $region29: #{tpu_custom_call.1} parent=5 // pred_check
        _
      $region30: #{tpu_custom_call.1} parent=5 // pred_check_branch
        %158 = sbr.rel (%p155) target = $region32
      $region31: #{tpu_custom_call.1} parent=5 // pred_region
        %s159 = ssub.s32 %s15, 1
        %s160 = sand.u32 %s28, 1
        %s161 = scalar_lea.sflag [#allocation3], %s160
        %s162 = sand.u32 %s28, 1
        %s163 = smul.addr %s162, 8
        %s164 = scalar_lea.vmem [#allocation2], %s163
        // Predicated region
        $region33: #{tpu_custom_call.1} parent=31 // pred_check
          %p165 = pneg %p41
        $region34: #{tpu_custom_call.1} parent=31 // pred_check_branch
          %167 = sbr.rel (%p165) target = $region36
        $region35: #{tpu_custom_call.1} parent=31 // pred_region
          %168 = dma.done %s161, 128
        $region36: #{tpu_custom_call.1} parent=31 // pred_fallthru
          _
        %s169 = sand.u32 %s28, 1
        %s170 = scalar_lea.sflag [#allocation3], %s169
        %s171 = sand.u32 %s28, 1
        %s172 = smul.addr %s171, 8
        %s173 = scalar_lea.vmem [#allocation2], %s172
        %p174 = pneg %p41
        %p175 = pneg %p38
        %p176 = pneg %p62
        %p177 = pneg %p59
        %p178 = pneg %p83
        %p179 = pneg %p80
        %p180 = pneg %p109
        %p181 = pneg %p106
        %s182 = sand.u32 %s96, 1
        %s183 = scalar_lea.sflag [#allocation4], %s182
        %s184 = sand.u32 %s96, 1
        %s185 = smul.addr %s184, 2
        %s186 = scalar_lea.vmem [#allocation5], %s185
        %s187 = smul.u32 2, %s20
        %s188 = smul.u32 2, %s20
        %v189 = vld [vmem:[%s1] sm:$0xff]
        %v190 = vld [vmem:[%s1 + $0x8] sm:$0xff]
        %v191 = vld [vmem:[%s164] sm:$0xff]
        %v192 = vld [vmem:[%s2] sm:$0xff]
        %v193 = vld [vmem:[%s2 + $0x8] sm:$0xff]
        %195 = vset.pattern.permute.xlu0 0
        %196 = vperm.xlu0 %195, %v192
        %v197 = vpop.permute.xlu0 %196
        %200 = vset.pattern.permute.xlu0 0
        %201 = vperm.xlu0 %200, %v193
        %v202 = vpop.permute.xlu0 %201
        %v205 = vcombine.high %v191, %v191
        %vm206 = vcmask 31744
        %v208 = vsel %vm206, %v189, 0
        %v211 = vsel %vm206, %v190, 0
        %vm213 = vcmask 1043456
        %v214 = vsel %vm213, %v191, 0
        %v216 = vsel %vm213, %v205, 0
        %218 = vmatprep.subr.mxu0 %v216
        %219 = vmatpush1.msra.mxu0 %v214
        %220 = vmatprep.subr.mxu0 0.0
        %221 = vmatpush1.msra.mxu0 0.0
        %222 = vmatprep.subr.mxu0 0.0
        %223 = vmatpush1.msra.mxu0 0.0
        %224 = vmatprep.subr.mxu0 0.0
        %225 = vmatpush1.msra.mxu0 0.0
        %226 = vmatprep.subr.mxu0 0.0
        %227 = vmatpush1.msra.mxu0 0.0
        %228 = vmatprep.subr.mxu0 0.0
        %229 = vmatpush1.msra.mxu0 0.0
        %230 = vmatprep.subr.mxu0 0.0
        %231 = vmatpush1.msra.mxu0 0.0
        %232 = vmatprep.subr.mxu0 0.0
        %233 = vmatpush1.msra.mxu0 0.0
        %234 = vmatprep.subr.mxu0 0.0
        %235 = vmatpush1.msra.mxu0 0.0
        %236 = vmatprep.subr.mxu0 0.0
        %237 = vmatpush1.msra.mxu0 0.0
        %238 = vmatprep.subr.mxu0 0.0
        %239 = vmatpush1.msra.mxu0 0.0
        %240 = vmatprep.subr.mxu0 0.0
        %241 = vmatpush1.msra.mxu0 0.0
        %242 = vmatprep.subr.mxu0 0.0
        %243 = vmatpush1.msra.mxu0 0.0
        %244 = vmatprep.subr.mxu0 0.0
        %245 = vmatpush1.msra.mxu0 0.0
        %246 = vmatprep.subr.mxu0 0.0
        %247 = vmatpush1.msra.mxu0 0.0
        %248 = vmatprep.subr.mxu0 0.0
        %249 = vmatpush1.msra.mxu0 0.0
        %250 = vmatprep.subr.mxu0 0.0
        %251 = vmatpush1.msra.mxu0 0.0
        %252 = vmatprep.subr.mxu0 0.0
        %253 = vmatpush1.msra.mxu0 0.0
        %254 = vmatprep.subr.mxu0 0.0
        %255 = vmatpush1.msra.mxu0 0.0
        %256 = vmatprep.subr.mxu0 0.0
        %257 = vmatpush1.msra.mxu0 0.0
        %258 = vmatprep.subr.mxu0 0.0
        %259 = vmatpush1.msra.mxu0 0.0
        %260 = vmatprep.subr.mxu0 0.0
        %261 = vmatpush1.msra.mxu0 0.0
        %262 = vmatprep.subr.mxu0 0.0
        %263 = vmatpush1.msra.mxu0 0.0
        %264 = vmatprep.subr.mxu0 0.0
        %265 = vmatpush1.msra.mxu0 0.0
        %266 = vmatprep.subr.mxu0 0.0
        %267 = vmatpush1.msra.mxu0 0.0
        %268 = vmatprep.subr.mxu0 0.0
        %269 = vmatpush1.msra.mxu0 0.0
        %270 = vmatprep.subr.mxu0 0.0
        %271 = vmatpush1.msra.mxu0 0.0
        %272 = vmatprep.subr.mxu0 0.0
        %273 = vmatpush1.msra.mxu0 0.0
        %274 = vmatprep.subr.mxu0 0.0
        %275 = vmatpush1.msra.mxu0 0.0
        %276 = vmatprep.subr.mxu0 0.0
        %277 = vmatpush1.msra.mxu0 0.0
        %278 = vmatprep.subr.mxu0 0.0
        %279 = vmatpush1.msra.mxu0 0.0
        %280 = vmatprep.subr.mxu0 0.0
        %281 = vmatpush1.msra.mxu0 0.0
        %282 = vmatprep.mubr.f32.mxu0 0.0
        %283 = vmatmul.mubr.f32.gmra.mrb[0].mxu0 %v208
        %v284 = vpop.f32.mrb[0].mxu0
        %v285 = vadd.f32 %v197, %v284
        %v286 = vpop.f32.mrb[0].mxu0
        %v287 = vadd.f32 %v197, %v286
        %288 = vmatprep.mubr.f32.mxu0 0.0
        %289 = vmatmul.mubr.f32.gmra.mrb[0].mxu0 %v211
        %v290 = vpop.f32.mrb[0].mxu0
        %v291 = vadd.f32 %v202, %v290
        %v292 = vpop.f32.mrb[0].mxu0
        %v293 = vadd.f32 %v202, %v292
        %294 = vdwg.mxu0
        %v295 = vmul.f32 %v285, 0.5
        %v296 = vmul.f32 %v287, 0.5
        %v297 = vmul.f32 %v291, 0.5
        %v298 = vmul.f32 %v293, 0.5
        %v299 = vtanh.pop %v295
        %v300 = vtanh.pop %v296
        %v301 = vtanh.pop %v297
        %v302 = vtanh.pop %v298
        %v303 = vmul.f32 %v299, 0.5
        %v304 = vmul.f32 %v300, 0.5
        %v305 = vmul.f32 %v301, 0.5
        %v306 = vmul.f32 %v302, 0.5
        %v307 = vadd.f32 %v303, 0.5
        %v308 = vadd.f32 %v304, 0.5
        %v309 = vadd.f32 %v305, 0.5
        %v310 = vadd.f32 %v306, 0.5
        %s311 = scalar_lea.vmem %s1, 16
        %v312 = vld [vmem:[%s311] sm:$0xff]
        %v313 = vld [vmem:[%s311 + $0x8] sm:$0xff]
        %s314 = scalar_lea.vmem %s2, 16
        %v315 = vld [vmem:[%s314] sm:$0xff]
        %v316 = vld [vmem:[%s314 + $0x8] sm:$0xff]
        %318 = vset.pattern.permute.xlu0 0
        %319 = vperm.xlu0 %318, %v315
        %v320 = vpop.permute.xlu0 %319
        %323 = vset.pattern.permute.xlu0 0
        %324 = vperm.xlu0 %323, %v316
        %v325 = vpop.permute.xlu0 %324
        %vm327 = vcmask 130048
        %v329 = vsel %vm327, %v312, 0
        %v332 = vsel %vm327, %v313, 0
        %334 = vmatprep.subr.mxu0 %v308
        %335 = vmatpush1.msra.mxu0 %v307
        %336 = vmatprep.subr.mxu0 %v310
        %337 = vmatpush1.msra.mxu0 %v309
        %338 = vmatprep.subr.mxu0 0.0
        %339 = vmatpush1.msra.mxu0 0.0
        %340 = vmatprep.subr.mxu0 0.0
        %341 = vmatpush1.msra.mxu0 0.0
        %342 = vmatprep.subr.mxu0 0.0
        %343 = vmatpush1.msra.mxu0 0.0
        %344 = vmatprep.subr.mxu0 0.0
        %345 = vmatpush1.msra.mxu0 0.0
        %346 = vmatprep.subr.mxu0 0.0
        %347 = vmatpush1.msra.mxu0 0.0
        %348 = vmatprep.subr.mxu0 0.0
        %349 = vmatpush1.msra.mxu0 0.0
        %350 = vmatprep.subr.mxu0 0.0
        %351 = vmatpush1.msra.mxu0 0.0
        %352 = vmatprep.subr.mxu0 0.0
        %353 = vmatpush1.msra.mxu0 0.0
        %354 = vmatprep.subr.mxu0 0.0
        %355 = vmatpush1.msra.mxu0 0.0
        %356 = vmatprep.subr.mxu0 0.0
        %357 = vmatpush1.msra.mxu0 0.0
        %358 = vmatprep.subr.mxu0 0.0
        %359 = vmatpush1.msra.mxu0 0.0
        %360 = vmatprep.subr.mxu0 0.0
        %361 = vmatpush1.msra.mxu0 0.0
        %362 = vmatprep.subr.mxu0 0.0
        %363 = vmatpush1.msra.mxu0 0.0
        %364 = vmatprep.subr.mxu0 0.0
        %365 = vmatpush1.msra.mxu0 0.0
        %366 = vmatprep.subr.mxu0 0.0
        %367 = vmatpush1.msra.mxu0 0.0
        %368 = vmatprep.subr.mxu0 0.0
        %369 = vmatpush1.msra.mxu0 0.0
        %370 = vmatprep.subr.mxu0 0.0
        %371 = vmatpush1.msra.mxu0 0.0
        %372 = vmatprep.subr.mxu0 0.0
        %373 = vmatpush1.msra.mxu0 0.0
        %374 = vmatprep.subr.mxu0 0.0
        %375 = vmatpush1.msra.mxu0 0.0
        %376 = vmatprep.subr.mxu0 0.0
        %377 = vmatpush1.msra.mxu0 0.0
        %378 = vmatprep.subr.mxu0 0.0
        %379 = vmatpush1.msra.mxu0 0.0
        %380 = vmatprep.subr.mxu0 0.0
        %381 = vmatpush1.msra.mxu0 0.0
        %382 = vmatprep.subr.mxu0 0.0
        %383 = vmatpush1.msra.mxu0 0.0
        %384 = vmatprep.subr.mxu0 0.0
        %385 = vmatpush1.msra.mxu0 0.0
        %386 = vmatprep.subr.mxu0 0.0
        %387 = vmatpush1.msra.mxu0 0.0
        %388 = vmatprep.subr.mxu0 0.0
        %389 = vmatpush1.msra.mxu0 0.0
        %390 = vmatprep.subr.mxu0 0.0
        %391 = vmatpush1.msra.mxu0 0.0
        %392 = vmatprep.subr.mxu0 0.0
        %393 = vmatpush1.msra.mxu0 0.0
        %394 = vmatprep.subr.mxu0 0.0
        %395 = vmatpush1.msra.mxu0 0.0
        %396 = vmatprep.subr.mxu0 0.0
        %397 = vmatpush1.msra.mxu0 0.0
        %398 = vmatprep.mubr.f32.mxu0 0.0
        %399 = vmatmul.mubr.f32.gmra.mrb[0].mxu0 %v329
        %v400 = vpop.f32.mrb[0].mxu0
        %v401 = vadd.f32 %v320, %v400
        %v402 = vpop.f32.mrb[0].mxu0
        %v403 = vadd.f32 %v320, %v402
        %404 = vmatprep.mubr.f32.mxu0 0.0
        %405 = vmatmul.mubr.f32.gmra.mrb[0].mxu0 %v332
        %v406 = vpop.f32.mrb[0].mxu0
        %v407 = vadd.f32 %v325, %v406
        %v408 = vpop.f32.mrb[0].mxu0
        %v409 = vadd.f32 %v325, %v408
        %410 = vdwg.mxu0
        %v411 = vmul.f32 %v401, 0.5
        %v412 = vmul.f32 %v403, 0.5
        %v413 = vmul.f32 %v407, 0.5
        %v414 = vmul.f32 %v409, 0.5
        %v415 = vtanh.pop %v411
        %v416 = vtanh.pop %v412
        %v417 = vtanh.pop %v413
        %v418 = vtanh.pop %v414
        %v419 = vmul.f32 %v415, 0.5
        %v420 = vmul.f32 %v416, 0.5
        %v421 = vmul.f32 %v417, 0.5
        %v422 = vmul.f32 %v418, 0.5
        %v423 = vadd.f32 %v419, 0.5
        %v424 = vadd.f32 %v420, 0.5
        %v425 = vadd.f32 %v421, 0.5
        %v426 = vadd.f32 %v422, 0.5
        %s427 = scalar_lea.vmem %s1, 32
        %v428 = vld [vmem:[%s427] sm:$0xff]
        %v429 = vld [vmem:[%s427 + $0x8] sm:$0xff]
        %s430 = scalar_lea.vmem %s2, 32
        %v431 = vld [vmem:[%s430] sm:$0xff]
        %v432 = vld [vmem:[%s430 + $0x8] sm:$0xff]
        %434 = vset.pattern.permute.xlu0 0
        %435 = vperm.xlu0 %434, %v431
        %v436 = vpop.permute.xlu0 %435
        %439 = vset.pattern.permute.xlu0 0
        %440 = vperm.xlu0 %439, %v432
        %v441 = vpop.permute.xlu0 %440
        %v444 = vsel %vm327, %v428, 0
        %v447 = vsel %vm327, %v429, 0
        %449 = vmatprep.subr.mxu0 %v424
        %450 = vmatpush1.msra.mxu0 %v423
        %451 = vmatprep.subr.mxu0 %v426
        %452 = vmatpush1.msra.mxu0 %v425
        %453 = vmatprep.subr.mxu0 0.0
        %454 = vmatpush1.msra.mxu0 0.0
        %455 = vmatprep.subr.mxu0 0.0
        %456 = vmatpush1.msra.mxu0 0.0
        %457 = vmatprep.subr.mxu0 0.0
        %458 = vmatpush1.msra.mxu0 0.0
        %459 = vmatprep.subr.mxu0 0.0
        %460 = vmatpush1.msra.mxu0 0.0
        %461 = vmatprep.subr.mxu0 0.0
        %462 = vmatpush1.msra.mxu0 0.0
        %463 = vmatprep.subr.mxu0 0.0
        %464 = vmatpush1.msra.mxu0 0.0
        %465 = vmatprep.subr.mxu0 0.0
        %466 = vmatpush1.msra.mxu0 0.0
        %467 = vmatprep.subr.mxu0 0.0
        %468 = vmatpush1.msra.mxu0 0.0
        %469 = vmatprep.subr.mxu0 0.0
        %470 = vmatpush1.msra.mxu0 0.0
        %471 = vmatprep.subr.mxu0 0.0
        %472 = vmatpush1.msra.mxu0 0.0
        %473 = vmatprep.subr.mxu0 0.0
        %474 = vmatpush1.msra.mxu0 0.0
        %475 = vmatprep.subr.mxu0 0.0
        %476 = vmatpush1.msra.mxu0 0.0
        %477 = vmatprep.subr.mxu0 0.0
        %478 = vmatpush1.msra.mxu0 0.0
        %479 = vmatprep.subr.mxu0 0.0
        %480 = vmatpush1.msra.mxu0 0.0
        %481 = vmatprep.subr.mxu0 0.0
        %482 = vmatpush1.msra.mxu0 0.0
        %483 = vmatprep.subr.mxu0 0.0
        %484 = vmatpush1.msra.mxu0 0.0
        %485 = vmatprep.subr.mxu0 0.0
        %486 = vmatpush1.msra.mxu0 0.0
        %487 = vmatprep.subr.mxu0 0.0
        %488 = vmatpush1.msra.mxu0 0.0
        %489 = vmatprep.subr.mxu0 0.0
        %490 = vmatpush1.msra.mxu0 0.0
        %491 = vmatprep.subr.mxu0 0.0
        %492 = vmatpush1.msra.mxu0 0.0
        %493 = vmatprep.subr.mxu0 0.0
        %494 = vmatpush1.msra.mxu0 0.0
        %495 = vmatprep.subr.mxu0 0.0
        %496 = vmatpush1.msra.mxu0 0.0
        %497 = vmatprep.subr.mxu0 0.0
        %498 = vmatpush1.msra.mxu0 0.0
        %499 = vmatprep.subr.mxu0 0.0
        %500 = vmatpush1.msra.mxu0 0.0
        %501 = vmatprep.subr.mxu0 0.0
        %502 = vmatpush1.msra.mxu0 0.0
        %503 = vmatprep.subr.mxu0 0.0
        %504 = vmatpush1.msra.mxu0 0.0
        %505 = vmatprep.subr.mxu0 0.0
        %506 = vmatpush1.msra.mxu0 0.0
        %507 = vmatprep.subr.mxu0 0.0
        %508 = vmatpush1.msra.mxu0 0.0
        %509 = vmatprep.subr.mxu0 0.0
        %510 = vmatpush1.msra.mxu0 0.0
        %511 = vmatprep.subr.mxu0 0.0
        %512 = vmatpush1.msra.mxu0 0.0
        %513 = vmatprep.mubr.f32.mxu0 0.0
        %514 = vmatmul.mubr.f32.gmra.mrb[0].mxu0 %v444
        %v515 = vpop.f32.mrb[0].mxu0
        %v516 = vadd.f32 %v436, %v515
        %v517 = vpop.f32.mrb[0].mxu0
        %v518 = vadd.f32 %v436, %v517
        %519 = vmatprep.mubr.f32.mxu0 0.0
        %520 = vmatmul.mubr.f32.gmra.mrb[0].mxu0 %v447
        %v521 = vpop.f32.mrb[0].mxu0
        %v522 = vadd.f32 %v441, %v521
        %v523 = vpop.f32.mrb[0].mxu0
        %v524 = vadd.f32 %v441, %v523
        %525 = vdwg.mxu0
        %v526 = vmul.f32 %v516, 0.5
        %v527 = vmul.f32 %v518, 0.5
        %v528 = vmul.f32 %v522, 0.5
        %v529 = vmul.f32 %v524, 0.5
        %v530 = vtanh.pop %v526
        %v531 = vtanh.pop %v527
        %v532 = vtanh.pop %v528
        %v533 = vtanh.pop %v529
        %v534 = vmul.f32 %v530, 0.5
        %v535 = vmul.f32 %v531, 0.5
        %v536 = vmul.f32 %v532, 0.5
        %v537 = vmul.f32 %v533, 0.5
        %v538 = vadd.f32 %v534, 0.5
        %v539 = vadd.f32 %v535, 0.5
        %v540 = vadd.f32 %v536, 0.5
        %v541 = vadd.f32 %v537, 0.5
        %s542 = scalar_lea.vmem %s1, 48
        %v543 = vld [vmem:[%s542] sm:$0x1]
        %s544 = scalar_lea.vmem %s2, 48
        %v545 = vld [vmem:[%s544] sm:$0x1]
        %547 = vset.pattern.permute.xlu0 0
        %548 = vperm.xlu0 %547, %v545
        %v549 = vpop.permute.xlu0 %548
        %v552 = vsel %vm327, %v543, 0
        %554 = vmatprep.subr.mxu0 %v539
        %555 = vmatpush1.msra.mxu0 %v538
        %556 = vmatprep.subr.mxu0 %v541
        %557 = vmatpush1.msra.mxu0 %v540
        %558 = vmatprep.subr.mxu0 0.0
        %559 = vmatpush1.msra.mxu0 0.0
        %560 = vmatprep.subr.mxu0 0.0
        %561 = vmatpush1.msra.mxu0 0.0
        %562 = vmatprep.subr.mxu0 0.0
        %563 = vmatpush1.msra.mxu0 0.0
        %564 = vmatprep.subr.mxu0 0.0
        %565 = vmatpush1.msra.mxu0 0.0
        %566 = vmatprep.subr.mxu0 0.0
        %567 = vmatpush1.msra.mxu0 0.0
        %568 = vmatprep.subr.mxu0 0.0
        %569 = vmatpush1.msra.mxu0 0.0
        %570 = vmatprep.subr.mxu0 0.0
        %571 = vmatpush1.msra.mxu0 0.0
        %572 = vmatprep.subr.mxu0 0.0
        %573 = vmatpush1.msra.mxu0 0.0
        %574 = vmatprep.subr.mxu0 0.0
        %575 = vmatpush1.msra.mxu0 0.0
        %576 = vmatprep.subr.mxu0 0.0
        %577 = vmatpush1.msra.mxu0 0.0
        %578 = vmatprep.subr.mxu0 0.0
        %579 = vmatpush1.msra.mxu0 0.0
        %580 = vmatprep.subr.mxu0 0.0
        %581 = vmatpush1.msra.mxu0 0.0
        %582 = vmatprep.subr.mxu0 0.0
        %583 = vmatpush1.msra.mxu0 0.0
        %584 = vmatprep.subr.mxu0 0.0
        %585 = vmatpush1.msra.mxu0 0.0
        %586 = vmatprep.subr.mxu0 0.0
        %587 = vmatpush1.msra.mxu0 0.0
        %588 = vmatprep.subr.mxu0 0.0
        %589 = vmatpush1.msra.mxu0 0.0
        %590 = vmatprep.subr.mxu0 0.0
        %591 = vmatpush1.msra.mxu0 0.0
        %592 = vmatprep.subr.mxu0 0.0
        %593 = vmatpush1.msra.mxu0 0.0
        %594 = vmatprep.subr.mxu0 0.0
        %595 = vmatpush1.msra.mxu0 0.0
        %596 = vmatprep.subr.mxu0 0.0
        %597 = vmatpush1.msra.mxu0 0.0
        %598 = vmatprep.subr.mxu0 0.0
        %599 = vmatpush1.msra.mxu0 0.0
        %600 = vmatprep.subr.mxu0 0.0
        %601 = vmatpush1.msra.mxu0 0.0
        %602 = vmatprep.subr.mxu0 0.0
        %603 = vmatpush1.msra.mxu0 0.0
        %604 = vmatprep.subr.mxu0 0.0
        %605 = vmatpush1.msra.mxu0 0.0
        %606 = vmatprep.subr.mxu0 0.0
        %607 = vmatpush1.msra.mxu0 0.0
        %608 = vmatprep.subr.mxu0 0.0
        %609 = vmatpush1.msra.mxu0 0.0
        %610 = vmatprep.subr.mxu0 0.0
        %611 = vmatpush1.msra.mxu0 0.0
        %612 = vmatprep.subr.mxu0 0.0
        %613 = vmatpush1.msra.mxu0 0.0
        %614 = vmatprep.subr.mxu0 0.0
        %615 = vmatpush1.msra.mxu0 0.0
        %616 = vmatprep.subr.mxu0 0.0
        %617 = vmatpush1.msra.mxu0 0.0
        %618 = vmatprep.mubr.f32.mxu0 0.0
        %619 = vmatmul.mubr.f32.gmra.mrb[0].mxu0 %v552
        %v620 = vpop.f32.mrb[0].mxu0
        %v621 = vadd.f32 %v549, %v620
        %v622 = vpop.f32.mrb[0].mxu0
        %v623 = vadd.f32 %v549, %v622
        %624 = vdwg.mxu0
        %v627 = vcombine.low %v621, %v623
        %v629 = vunpack.c.l.s4 1966171168
        %v630 = vunpack.c.0.s8 %v629
        %v631 = vlaneseq
        %v632 = vshrl.u32 %v631, 7
        %v633 = vsub.s32 %v630, %v632
        %v634 = vrot.slane %v627, %v633
        %v636 = vunpack.c.l.s4 1966171168
        %v637 = vunpack.c.0.s8 %v636
        %v638 = vlaneseq
        %v639 = vshrl.u32 %v638, 7
        %v640 = vsub.s32 %v637, %v639
        %v641 = vrot.slane %v634, %v640
        %v643 = vlaneseq
        %vm644 = vcmp.ge.s32.totalorder %v643, 0
        %vm645 = vcmp.lt.s32.totalorder %v643, 256
        %vm646 = vmand %vm644, %vm645
        %647 = vst.msk [vmem:[%s186] sm:$0x3] %vm646, %v641
        %s648 = sand.u32 %s96, 1
        %s649 = scalar_lea.sflag [#allocation4], %s648
        %s650 = sand.u32 %s96, 1
        %s651 = smul.addr %s650, 2
        %s652 = scalar_lea.vmem [#allocation5], %s651
        // Predicated region
        $region37: #{tpu_custom_call.1} parent=31 // pred_check
          %p653 = pneg %p106
        $region38: #{tpu_custom_call.1} parent=31 // pred_check_branch
          %655 = sbr.rel (%p653) target = $region40
        $region39: #{tpu_custom_call.1} parent=31 // pred_region
          %s656 = smul.u32 2, %s20
          %s658 = ssub.s32 32, 32
          %659 = vsyncadd %s649, %s658
          %s660 = smul.addr %s656, 16
          %s661 = scalar_lea.hbm %s3, %s660
          %s663 = sshll.u32 %s652, 4
          %s664 = int_to_ptr.vmem [resolvable:$true] %s663
          %666 = dma.vmem_to_hbm [thread:$0]  %s664, 32, %s661, %s649
        $region40: #{tpu_custom_call.1} parent=31 // pred_fallthru
          _
      $region32: #{tpu_custom_call.1} parent=5 // pred_fallthru
        _
      %p667 = scmp.le.s32.totalorder 2, %s15
      // Predicated region
      $region41: #{tpu_custom_call.1} parent=5 // pred_check
        %p668 = pneg %p667
      $region42: #{tpu_custom_call.1} parent=5 // pred_check_branch
        %670 = sbr.rel (%p668) target = $region44
      $region43: #{tpu_custom_call.1} parent=5 // pred_region
        %s671 = ssub.s32 %s15, 2
        // Predicated region
        $region45: #{tpu_custom_call.1} parent=43 // pred_check
          %p672 = pneg %p112
        $region46: #{tpu_custom_call.1} parent=43 // pred_check_branch
          %674 = sbr.rel (%p672) target = $region48
        $region47: #{tpu_custom_call.1} parent=43 // pred_region
          %s675 = sand.u32 %s97, 1
          %s676 = scalar_lea.sflag [#allocation4], %s675
          %s677 = sand.u32 %s97, 1
          %s678 = smul.addr %s677, 2
          %s679 = scalar_lea.vmem [#allocation5], %s678
          %680 = dma.done %s676, 32
        $region48: #{tpu_custom_call.1} parent=43 // pred_fallthru
          _
      $region44: #{tpu_custom_call.1} parent=5 // pred_fallthru
        _
    $region6: #{tpu_custom_call.1} parent=1 // loop_footer
      %s19 = sadd.s32 1, %s15
    $region7: #{tpu_custom_call.1} parent=1 // loop_footer_branch
      %14 = sbr.rel target = $region3
    $region8: #{tpu_custom_call.1} parent=1 // loop_exit
      _
    %681 = vsyncpa [#allocation3], 1
    %s682 = scalar_lea.sflag [#allocation3], 1
    %683 = vsyncpa %s682, 1
    %684 = vsyncpa [#allocation4], 1
    %s685 = scalar_lea.sflag [#allocation4], 1
    %686 = vsyncpa %s685, 1

</llo_original>
